<compile_context>
chip_gen: v7x
topology: tpu7x:2x2x1
jax: 0.10.0
libtpu: 0.0.40
codegen_flags: <defaults>
</compile_context>

<pallas_src>
import jax
import jax.numpy as jnp
from jax.experimental import pallas as pl
from jax.experimental.pallas import tpu as pltpu


SUB = 8                      # f32 sublanes per vreg
LANE = 128                   # lanes per vreg
PREF_BLOCK_ROWS = 4096       # preferred rows per block: (4096,128) f32 = 2 MiB per input block
VMEM_LIMIT_BYTES = 32 * 1024 * 1024


def _round_up(x, m):
    return (x + m - 1) // m * m


def _device_kind():
    try:
        return jax.devices()[0].device_kind.lower()
    except Exception:
        return ""


def _is_v7():
    k = _device_kind()
    return ("v7" in k) or ("7x" in k)


def _num_core_slices():
    # v7x has 2 TensorCores per chip; v5e/v6e have 1 (a size-2 "parallel" axis would just
    # serialize there and can force a fully-masked duplicate block).
    return 2 if _is_v7() else 1


def _sublane_align(dtype):
    # Native (sublane,128) tiling: (8,128) f32, (16,128) bf16/f16, (32,128) int8/uint8.
    return max(SUB, 32 // max(1, jnp.dtype(dtype).itemsize))


def _make_in_spec(block_rows, index_map, n_buffers):
    if n_buffers > 2 and hasattr(pl, "Buffered"):
        try:
            return pl.BlockSpec((block_rows, LANE), index_map,
                                pipeline_mode=pl.Buffered(n_buffers))
        except TypeError:
            pass  # older jax without pipeline_mode kwarg -> default double buffering
    return pl.BlockSpec((block_rows, LANE), index_map)


def _reduce_sums(pred, target, *, trans_dtype=jnp.float32):
    """Single-pass streaming Pallas reduction.

    Returns (sum_bce, sum_p*t, sum_p, sum_t, n) with, per element,
      bce = max(x,0) - x*t + log1p(exp(-|x|))   (stable BCE-with-logits)
      p   = sigmoid(x)
    All accumulation in f32; exp/log1p optionally in `trans_dtype` (bf16 on v7x).
    """
    n = pred.size
    flat_p = pred.reshape(-1)
    flat_t = target.reshape(-1)

    rem = (-n) % LANE
    if rem:
        # TODO(synk): this <=127-element lane pad still materializes a full HBM copy of both
        # inputs when numel % 128 != 0 (XLA pad/slice both copy); a truly copy-free tail needs
        # a manual-DMA 1-D formulation. For the segmentation shapes this loss is trained with,
        # numel is a multiple of 128 and this path is never taken (zero-copy reshape).
        flat_p = jnp.pad(flat_p, (0, rem))
        flat_t = jnp.pad(flat_t, (0, rem))
    rows = (n + rem) // LANE

    row_align = max(_sublane_align(pred.dtype), _sublane_align(target.dtype))
    block_rows = min(PREF_BLOCK_ROWS, _round_up(rows, row_align))
    nblocks = pl.cdiv(rows, block_rows)

    ncores = _num_core_slices()
    if nblocks < ncores:
        ncores = 1
    elif nblocks % ncores:
        # v7x dual-TC path: re-pick the block size so the block count splits evenly across
        # cores -> no DMA'd-and-fully-masked duplicate block per call.
        tgt_blocks = _round_up(nblocks, ncores)
        cand = _round_up(pl.cdiv(rows, tgt_blocks), row_align)
        if pl.cdiv(rows, cand) % ncores == 0:
            block_rows = cand
            nblocks = pl.cdiv(rows, cand)

    block_elems = block_rows * LANE
    groups = block_rows // SUB
    blocks_per_core = pl.cdiv(nblocks, ncores)
    full_blocks = n // block_elems                  # blocks with no padded / OOB elements
    any_masked = (ncores * blocks_per_core) > full_blocks

    P = flat_p.reshape(rows, LANE)
    T = flat_t.reshape(rows, LANE)

    trans_is_f32 = jnp.dtype(trans_dtype) == jnp.dtype(jnp.float32)

    def kernel(p_ref, t_ref, acc_ref):
        # acc_ref: (4, SUB, LANE) resident accumulator (one per core slice).
        c = pl.program_id(0)
        j = pl.program_id(1)
        nominal = c * blocks_per_core + j

        @pl.when(j == 0)
        def _():
            acc_ref[...] = jnp.zeros_like(acc_ref)

        x = p_ref[...].astype(jnp.float32)
        t = t_ref[...].astype(jnp.float32)

        # Stable BCE-with-logits + sigmoid, reusing one exp:
        #   bce = max(x,0) - x*t + log1p(e),  e = exp(-|x|)
        #   p   = 1/(1+e) if x>=0 else e/(1+e)
        if trans_is_f32:
            e = jnp.exp(-jnp.abs(x))
            log1pe = jnp.log1p(e)
        else:
            # v7x: EUP is the likely binding unit; run the two transcendentals in bf16,
            # accumulate everything in f32.
            e_n = jnp.exp(-jnp.abs(x).astype(trans_dtype))
            log1pe = jnp.log1p(e_n).astype(jnp.float32)
            e = e_n.astype(jnp.float32)
        bce = jnp.maximum(x, 0.0) - x * t + log1pe
        r = pl.reciprocal(1.0 + e, approx=True)
        p = jnp.where(x >= 0.0, r, e * r)
        pt = p * t

        def fold(v):
            # (block_rows,128) -> (groups, SUB, LANE); cheap VPU adds over axis 0.
            return jnp.sum(v.reshape(groups, SUB, LANE), axis=0)

        def update(bce_v, pt_v, p_v, t_v):
            upd = jnp.stack([fold(bce_v), fold(pt_v), fold(p_v), fold(t_v)], axis=0)
            acc_ref[...] = acc_ref[...] + upd       # single accumulator RMW per step

        if any_masked:
            @pl.when(nominal < full_blocks)
            def _():
                update(bce, pt, p, t)

            @pl.when(nominal >= full_blocks)
            def _():
                # Tail / out-of-range block: SELECT (not multiply) against the global element
                # index, so garbage (possibly NaN/Inf) in padded rows cannot leak into sums.
                row_i = jax.lax.broadcasted_iota(jnp.int32, (block_rows, LANE), 0)
                lane_i = jax.lax.broadcasted_iota(jnp.int32, (block_rows, LANE), 1)
                elem = nominal * block_elems + row_i * LANE + lane_i
                valid = elem < n
                zero = jnp.zeros_like(bce)
                update(jnp.where(valid, bce, zero),
                       jnp.where(valid, pt, zero),
                       jnp.where(valid, p, zero),
                       jnp.where(valid, t, zero))
        else:
            update(bce, pt, p, t)

    def in_map(c, j):
        # Clamp so the DMA never points past the array; any residual clamped duplicate block
        # is fully masked out in-kernel via its nominal element index (>= n).
        blk = jnp.minimum(c * blocks_per_core + j, nblocks - 1)
        return (blk, 0)

    n_buffers = 3 if (_is_v7() and blocks_per_core >= 3) else 2
    in_spec = _make_in_spec(block_rows, in_map, n_buffers)
    out_spec = pl.BlockSpec((None, 4, SUB, LANE), lambda c, j: (c, 0, 0, 0))

    acc = pl.pallas_call(
        kernel,
        out_shape=jax.ShapeDtypeStruct((ncores, 4, SUB, LANE), jnp.float32),
        grid_spec=pltpu.PrefetchScalarGridSpec(
            num_scalar_prefetch=0,
            grid=(ncores, blocks_per_core),
            in_specs=[in_spec, in_spec],
            out_specs=out_spec,
        ),
        compiler_params=pltpu.CompilerParams(
            dimension_semantics=("parallel", "arbitrary"),
            vmem_limit_bytes=VMEM_LIMIT_BYTES,
        ),
    )(P, T)

    sums = jnp.sum(acc, axis=(0, 2, 3))   # tiny (ncores*4, 8, 128) final reduce in JAX
    return sums[0], sums[1], sums[2], sums[3], n


def combined_loss(pred, target, weight1=0.5, weight2=0.5, eps=1e-6,
                  transcendental_dtype=None):
    """weight1 * BCEWithLogits(pred, target) + weight2 * SoftDice(pred, target)."""
    if transcendental_dtype is None:
        transcendental_dtype = jnp.bfloat16 if _is_v7() else jnp.float32
    bce_sum, pt_sum, p_sum, t_sum, n = _reduce_sums(
        pred, target, trans_dtype=transcendental_dtype)
    bce_mean = bce_sum / jnp.float32(n)                          # loss1 (mean reduction)
    dice = 1.0 - (2.0 * pt_sum + eps) / (p_sum + t_sum + eps)    # loss2 (soft dice)
    return weight1 * bce_mean + weight2 * dice


def _reference(pred, target, weight1=0.5, weight2=0.5, eps=1e-6):
    x = pred.astype(jnp.float32)
    t = target.astype(jnp.float32)
    bce = jnp.mean(jnp.maximum(x, 0.0) - x * t + jnp.log1p(jnp.exp(-jnp.abs(x))))
    p = jax.nn.sigmoid(x)
    dice = 1.0 - (2.0 * jnp.sum(p * t) + eps) / (jnp.sum(p) + jnp.sum(t) + eps)
    return weight1 * bce + weight2 * dice


if __name__ == "__main__":
    key = jax.random.PRNGKey(0)
    k1, k2, k3, k4, k5, k6, k7, k8 = jax.random.split(key, 8)

    # bf16 transcendentals (auto-enabled only on v7x) loosen the tolerance slightly.
    tol = 2e-3 if _is_v7() else 3e-4

    def check(pred, targ):
        out = jax.block_until_ready(combined_loss(pred, targ))
        ref = _reference(pred, targ)
        assert jnp.allclose(out, ref, atol=tol, rtol=tol), (out, ref)

    # Case 1: NCHW logits / binary targets, numel a multiple of 128 (zero-copy path).
    pred1 = jax.random.normal(k1, (2, 1, 16, 16), dtype=jnp.float32)
    targ1 = (jax.random.uniform(k2, (2, 1, 16, 16)) > 0.5).astype(jnp.float32)
    check(pred1, targ1)

    # Case 2: numel NOT a multiple of 128 -> exercises the lane pad + in-kernel tail mask.
    pred2 = jax.random.normal(k3, (3, 1, 20, 19), dtype=jnp.float32)
    targ2 = (jax.random.uniform(k4, (3, 1, 20, 19)) > 0.5).astype(jnp.float32)
    check(pred2, targ2)

    # Case 3: narrow dtypes (bf16 logits + bf16 targets) -> fewer HBM bytes streamed,
    #         math upcast to f32 inside the kernel; block rows aligned to (16,128) tiling.
    pred3 = jax.random.normal(k5, (2, 1, 32, 32), dtype=jnp.float32).astype(jnp.bfloat16)
    targ3 = (jax.random.uniform(k6, (2, 1, 32, 32)) > 0.5).astype(jnp.bfloat16)
    check(pred3, targ3)

    # Case 4: multi-block grid (rows > block_rows) -> exercises the resident accumulator
    #         across grid steps plus the partial last block.
    pred4 = jax.random.normal(k7, (2, 1, 512, 640), dtype=jnp.float32)
    targ4 = (jax.random.uniform(k8, (2, 1, 512, 640)) > 0.5).astype(jnp.float32)
    check(pred4, targ4)

    print("KERNEL_OK")
</pallas_src>

<mosaic_0001>
module attributes {stable_mosaic.version = 11 : i64} {
  func.func @kernel(%arg0: i32, %arg1: i32, %arg2: memref<8x128xf32, #tpu.memory_space<vmem>>, %arg3: memref<8x128xf32, #tpu.memory_space<vmem>>, %arg4: memref<1x4x8x128xf32, #tpu.memory_space<vmem>>) attributes {dimension_semantics = [#tpu.dimension_semantics<parallel>, #tpu.dimension_semantics<arbitrary>], iteration_bounds = array<i64: 1, 1>, scalar_prefetch = 0 : i64, scratch_operands = 0 : i64, tpu.core_type = #tpu.core_type<tc>, window_params = [{transform_indices = @transform_0, window_bounds = array<i64: 8, 128>}, {transform_indices = @transform_1, window_bounds = array<i64: 8, 128>}, {transform_indices = @transform_2, window_bounds = array<i64: 1, 4, 8, 128>}]} {
    %c1_i32 = arith.constant 1 : i32
    %0 = arith.muli %arg0, %c1_i32 : i32
    %1 = arith.addi %0, %arg1 : i32
    %c0_i32 = arith.constant 0 : i32
    %2 = arith.cmpi eq, %arg1, %c0_i32 : i32
    %3 = arith.extui %2 : i1 to i32
    %c0_i32_0 = arith.constant 0 : i32
    %4 = arith.cmpi ne, %3, %c0_i32_0 : i32
    scf.if %4 {
      %cst_11 = arith.constant 0.000000e+00 : f32
      %31 = vector.broadcast %cst_11 : f32 to vector<4x8x128xf32>
      %c0_12 = arith.constant 0 : index
      %c0_13 = arith.constant 0 : index
      %c0_14 = arith.constant 0 : index
      %c0_15 = arith.constant 0 : index
      %32 = vector.load %arg4[%c0_12, %c0_13, %c0_14, %c0_15] : memref<1x4x8x128xf32, #tpu.memory_space<vmem>>, vector<1x4x8x128xf32>
      %33 = vector.shape_cast %32 : vector<1x4x8x128xf32> to vector<4x8x128xf32>
      %34 = vector.shape_cast %31 : vector<4x8x128xf32> to vector<1x4x8x128xf32>
      tpu.vector_store %arg4[%c0_12, %c0_13, %c0_14, %c0_15], %34 {strides = array<i32>} : memref<1x4x8x128xf32, #tpu.memory_space<vmem>>, vector<1x4x8x128xf32>,
    } else {
    }
    %c0 = arith.constant 0 : index
    %c0_1 = arith.constant 0 : index
    %5 = vector.load %arg2[%c0, %c0_1] : memref<8x128xf32, #tpu.memory_space<vmem>>, vector<8x128xf32>
    %c0_2 = arith.constant 0 : index
    %c0_3 = arith.constant 0 : index
    %6 = vector.load %arg3[%c0_2, %c0_3] : memref<8x128xf32, #tpu.memory_space<vmem>>, vector<8x128xf32>
    %7 = math.absf %5 : vector<8x128xf32>
    %cst = arith.constant 0.000000e+00 : f32
    %8 = vector.broadcast %cst : f32 to vector<8x128xf32>
    %9 = arith.subf %8, %7 : vector<8x128xf32>
    %10 = math.exp %9 : vector<8x128xf32>
    %11 = math.log1p %10 : vector<8x128xf32>
    %cst_4 = arith.constant 0.000000e+00 : f32
    %12 = vector.broadcast %cst_4 : f32 to vector<8x128xf32>
    %13 = arith.maximumf %5, %12 : vector<8x128xf32>
    %14 = arith.mulf %5, %6 : vector<8x128xf32>
    %15 = arith.subf %13, %14 : vector<8x128xf32>
    %16 = arith.addf %15, %11 : vector<8x128xf32>
    %cst_5 = arith.constant 1.000000e+00 : f32
    %17 = vector.broadcast %cst_5 : f32 to vector<8x128xf32>
    %18 = arith.addf %17, %10 : vector<8x128xf32>
    %19 = tpu.reciprocal %18 {approx = true} : vector<8x128xf32> -> vector<8x128xf32>
    %cst_6 = arith.constant 0.000000e+00 : f32
    %20 = vector.broadcast %cst_6 : f32 to vector<8x128xf32>
    %21 = arith.cmpf oge, %5, %20 : vector<8x128xf32>
    %22 = arith.mulf %10, %19 : vector<8x128xf32>
    %23 = arith.select %21, %19, %22 : vector<8x128xi1>, vector<8x128xf32>
    %24 = arith.mulf %23, %6 : vector<8x128xf32>
    %c0_i32_7 = arith.constant 0 : i32
    %25 = arith.cmpi slt, %1, %c0_i32_7 : i32
    %26 = arith.extui %25 : i1 to i32
    %c0_i32_8 = arith.constant 0 : i32
    %27 = arith.cmpi ne, %26, %c0_i32_8 : i32
    scf.if %27 {
      %31 = vector.shape_cast %16 : vector<8x128xf32> to vector<1x8x128xf32>
      %cst_11 = arith.constant dense<0.000000e+00> : vector<8x128xf32>
      %32 = vector.multi_reduction <add>, %31, %cst_11 [0] : vector<1x8x128xf32> to vector<8x128xf32>
      %33 = vector.shape_cast %24 : vector<8x128xf32> to vector<1x8x128xf32>
      %cst_12 = arith.constant dense<0.000000e+00> : vector<8x128xf32>
      %34 = vector.multi_reduction <add>, %33, %cst_12 [0] : vector<1x8x128xf32> to vector<8x128xf32>
      %35 = vector.shape_cast %23 : vector<8x128xf32> to vector<1x8x128xf32>
      %cst_13 = arith.constant dense<0.000000e+00> : vector<8x128xf32>
      %36 = vector.multi_reduction <add>, %35, %cst_13 [0] : vector<1x8x128xf32> to vector<8x128xf32>
      %37 = vector.shape_cast %6 : vector<8x128xf32> to vector<1x8x128xf32>
      %cst_14 = arith.constant dense<0.000000e+00> : vector<8x128xf32>
      %38 = vector.multi_reduction <add>, %37, %cst_14 [0] : vector<1x8x128xf32> to vector<8x128xf32>
      %39 = vector.shape_cast %32 : vector<8x128xf32> to vector<1x8x128xf32>
      %40 = vector.shape_cast %34 : vector<8x128xf32> to vector<1x8x128xf32>
      %41 = vector.shape_cast %36 : vector<8x128xf32> to vector<1x8x128xf32>
      %42 = vector.shape_cast %38 : vector<8x128xf32> to vector<1x8x128xf32>
      %43 = tpu.concatenate %39, %40, %41, %42 in 0 : vector<1x8x128xf32>, vector<1x8x128xf32>, vector<1x8x128xf32>, vector<1x8x128xf32> -> vector<4x8x128xf32>
      %c0_15 = arith.constant 0 : index
      %c0_16 = arith.constant 0 : index
      %c0_17 = arith.constant 0 : index
      %c0_18 = arith.constant 0 : index
      %44 = vector.load %arg4[%c0_15, %c0_16, %c0_17, %c0_18] : memref<1x4x8x128xf32, #tpu.memory_space<vmem>>, vector<1x4x8x128xf32>
      %45 = vector.shape_cast %44 : vector<1x4x8x128xf32> to vector<4x8x128xf32>
      %46 = arith.addf %45, %43 : vector<4x8x128xf32>
      %c0_19 = arith.constant 0 : index
      %c0_20 = arith.constant 0 : index
      %c0_21 = arith.constant 0 : index
      %c0_22 = arith.constant 0 : index
      %47 = vector.load %arg4[%c0_19, %c0_20, %c0_21, %c0_22] : memref<1x4x8x128xf32, #tpu.memory_space<vmem>>, vector<1x4x8x128xf32>
      %48 = vector.shape_cast %47 : vector<1x4x8x128xf32> to vector<4x8x128xf32>
      %49 = vector.shape_cast %46 : vector<4x8x128xf32> to vector<1x4x8x128xf32>
      tpu.vector_store %arg4[%c0_19, %c0_20, %c0_21, %c0_22], %49 {strides = array<i32>} : memref<1x4x8x128xf32, #tpu.memory_space<vmem>>, vector<1x4x8x128xf32>,
    } else {
    }
    %c0_i32_9 = arith.constant 0 : i32
    %28 = arith.cmpi sge, %1, %c0_i32_9 : i32
    %29 = arith.extui %28 : i1 to i32
    %c0_i32_10 = arith.constant 0 : i32
    %30 = arith.cmpi ne, %29, %c0_i32_10 : i32
    scf.if %30 {
      %31 = tpu.iota {dimensions = array<i32: 0>} : vector<8x128xi32>
      %32 = tpu.iota {dimensions = array<i32: 1>} : vector<8x128xi32>
      %c1024_i32 = arith.constant 1024 : i32
      %33 = arith.muli %1, %c1024_i32 : i32
      %c128_i32 = arith.constant 128 : i32
      %34 = vector.broadcast %c128_i32 : i32 to vector<8x128xi32>
      %35 = arith.muli %31, %34 : vector<8x128xi32>
      %36 = vector.broadcast %33 : i32 to vector<8x128xi32>
      %37 = arith.addi %36, %35 : vector<8x128xi32>
      %38 = arith.addi %37, %32 : vector<8x128xi32>
      %c512_i32 = arith.constant 512 : i32
      %39 = vector.broadcast %c512_i32 : i32 to vector<8x128xi32>
      %40 = arith.cmpi slt, %38, %39 : vector<8x128xi32>
      %cst_11 = arith.constant 0.000000e+00 : f32
      %41 = vector.broadcast %cst_11 : f32 to vector<8x128xf32>
      %42 = arith.select %40, %16, %41 : vector<8x128xi1>, vector<8x128xf32>
      %43 = arith.select %40, %24, %41 : vector<8x128xi1>, vector<8x128xf32>
      %44 = arith.select %40, %23, %41 : vector<8x128xi1>, vector<8x128xf32>
      %45 = arith.select %40, %6, %41 : vector<8x128xi1>, vector<8x128xf32>
      %46 = vector.shape_cast %42 : vector<8x128xf32> to vector<1x8x128xf32>
      %cst_12 = arith.constant dense<0.000000e+00> : vector<8x128xf32>
      %47 = vector.multi_reduction <add>, %46, %cst_12 [0] : vector<1x8x128xf32> to vector<8x128xf32>
      %48 = vector.shape_cast %43 : vector<8x128xf32> to vector<1x8x128xf32>
      %cst_13 = arith.constant dense<0.000000e+00> : vector<8x128xf32>
      %49 = vector.multi_reduction <add>, %48, %cst_13 [0] : vector<1x8x128xf32> to vector<8x128xf32>
      %50 = vector.shape_cast %44 : vector<8x128xf32> to vector<1x8x128xf32>
      %cst_14 = arith.constant dense<0.000000e+00> : vector<8x128xf32>
      %51 = vector.multi_reduction <add>, %50, %cst_14 [0] : vector<1x8x128xf32> to vector<8x128xf32>
      %52 = vector.shape_cast %45 : vector<8x128xf32> to vector<1x8x128xf32>
      %cst_15 = arith.constant dense<0.000000e+00> : vector<8x128xf32>
      %53 = vector.multi_reduction <add>, %52, %cst_15 [0] : vector<1x8x128xf32> to vector<8x128xf32>
      %54 = vector.shape_cast %47 : vector<8x128xf32> to vector<1x8x128xf32>
      %55 = vector.shape_cast %49 : vector<8x128xf32> to vector<1x8x128xf32>
      %56 = vector.shape_cast %51 : vector<8x128xf32> to vector<1x8x128xf32>
      %57 = vector.shape_cast %53 : vector<8x128xf32> to vector<1x8x128xf32>
      %58 = tpu.concatenate %54, %55, %56, %57 in 0 : vector<1x8x128xf32>, vector<1x8x128xf32>, vector<1x8x128xf32>, vector<1x8x128xf32> -> vector<4x8x128xf32>
      %c0_16 = arith.constant 0 : index
      %c0_17 = arith.constant 0 : index
      %c0_18 = arith.constant 0 : index
      %c0_19 = arith.constant 0 : index
      %59 = vector.load %arg4[%c0_16, %c0_17, %c0_18, %c0_19] : memref<1x4x8x128xf32, #tpu.memory_space<vmem>>, vector<1x4x8x128xf32>
      %60 = vector.shape_cast %59 : vector<1x4x8x128xf32> to vector<4x8x128xf32>
      %61 = arith.addf %60, %58 : vector<4x8x128xf32>
      %c0_20 = arith.constant 0 : index
      %c0_21 = arith.constant 0 : index
      %c0_22 = arith.constant 0 : index
      %c0_23 = arith.constant 0 : index
      %62 = vector.load %arg4[%c0_20, %c0_21, %c0_22, %c0_23] : memref<1x4x8x128xf32, #tpu.memory_space<vmem>>, vector<1x4x8x128xf32>
      %63 = vector.shape_cast %62 : vector<1x4x8x128xf32> to vector<4x8x128xf32>
      %64 = vector.shape_cast %61 : vector<4x8x128xf32> to vector<1x4x8x128xf32>
      tpu.vector_store %arg4[%c0_20, %c0_21, %c0_22, %c0_23], %64 {strides = array<i32>} : memref<1x4x8x128xf32, #tpu.memory_space<vmem>>, vector<1x4x8x128xf32>,
    } else {
    }
    return
  }
  func.func @transform_0(%arg0: i32, %arg1: i32) -> (i32, i32) {
    %c1_i32 = arith.constant 1 : i32
    %0 = arith.muli %arg0, %c1_i32 : i32
    %1 = arith.addi %0, %arg1 : i32
    %c0_i32 = arith.constant 0 : i32
    %2 = arith.minsi %1, %c0_i32 : i32
    %c0_i32_0 = arith.constant 0 : i32
    %c0_i32_1 = arith.constant 0 : i32
    return %2, %c0_i32_0 : i32, i32
  }
  func.func @transform_1(%arg0: i32, %arg1: i32) -> (i32, i32) {
    %c1_i32 = arith.constant 1 : i32
    %0 = arith.muli %arg0, %c1_i32 : i32
    %1 = arith.addi %0, %arg1 : i32
    %c0_i32 = arith.constant 0 : i32
    %2 = arith.minsi %1, %c0_i32 : i32
    %c0_i32_0 = arith.constant 0 : i32
    %c0_i32_1 = arith.constant 0 : i32
    return %2, %c0_i32_0 : i32, i32
  }
  func.func @transform_2(%arg0: i32, %arg1: i32) -> (i32, i32, i32, i32) {
    %c0_i32 = arith.constant 0 : i32
    %c0_i32_0 = arith.constant 0 : i32
    %c0_i32_1 = arith.constant 0 : i32
    %c0_i32_2 = arith.constant 0 : i32
    return %arg0, %c0_i32, %c0_i32_0, %c0_i32_1 : i32, i32, i32, i32
  }
}

</mosaic_0001>

<llo_original>
// kernel: tpu_custom_call.1
$region0: #{tpu_custom_call.1}
  #allocation0 [shape = 'u32[]', space=smem, size = 0x4, offset = 0x4, fixed_abs, tag = 'smem constant byte address 0x4 - core index']
  #allocation1 [shape = 'u32[144,128]{1,0:T(1,128)}', space=vmem, size = 0x12000, scoped, tag = 'internal scratch']
  %s0 = inlined_call_operand.hbm [shape: f32[4,128], index: 0, kind: input, shape index: {}]
  %s1 = inlined_call_operand.hbm [shape: f32[4,128], index: 1, kind: input, shape index: {}]
  %s2 = inlined_call_operand.hbm [shape: f32[1,4,8,128], index: 2, kind: output, shape index: {}]
  %s3 = sld [smem:[#allocation0]]
  $region38: #{tpu_custom_call.1} parent=0
    _
  %s5 = ssub.s32 1, %s3
  %s6 = scalar_select 0, %s5, %s3
  $region1: #{tpu_custom_call.1} parent=0
    #allocation2 [shape = 'u8[4096]{0}', space=vmem, size = 0x1000, scoped, tag = 'input window, operand 0, single buffered']
    #allocation3 [shape = 's32[1]{0}', space=sflag, size = 0x4, scoped, tag = 'scoped memory for tpu_custom_call.1']
    #allocation4 [shape = 's32[1]{0}', space=sflag, size = 0x4, scoped, tag = 'scoped memory for tpu_custom_call.1']
    #allocation5 [shape = 'u8[4096]{0}', space=vmem, size = 0x1000, scoped, tag = 'input window, operand 1, single buffered']
    #allocation6 [shape = 's32[1]{0}', space=sflag, size = 0x4, scoped, tag = 'scoped memory for tpu_custom_call.1']
    #allocation7 [shape = 'u8[16384]{0}', space=vmem, size = 0x4000, scoped, tag = 'output window, operand 0, single buffered']
    %7 = vsyncpa [#allocation3], 0
    %8 = vsyncpa [#allocation6], 0
    %9 = vsyncpa [#allocation4], 0
    // Predicated region
    $region2: #{tpu_custom_call.1} parent=1 // pred_check
      _
    $region3: #{tpu_custom_call.1} parent=1 // pred_check_branch
      %11 = sbr.rel (0) target = $region5
    $region4: #{tpu_custom_call.1} parent=1 // pred_region
      %s12 = sadd.s32 0, 0
      %p13 = scmp.lt.s32.totalorder %s12, 0
      %s14 = scalar_select %p13, %s12, 0
      %s15 = smul.u32 2, %s14
      %s16 = ssub.s32 1, %s15
      %s17 = smul.u32 64, %s16
      %s19 = ssub.s32 128, %s17
      %20 = vsyncadd [#allocation3], %s19
      %p21 = scmp.ne.s32.totalorder 0, %s17
      %s22 = smul.addr %s15, 64
      %s23 = scalar_lea.hbm %s0, %s22
      %s24 = smul.u32 4, %s16
      %s25 = sshll.u32 [#allocation2], 4
      %s26 = int_to_ptr.vmem [resolvable:$true] %s25
      %s27 = sshll.u32 %s24, 4
      %31 = dma.hbm_to_vmem [thread:$0]  (%p21), %s23, %s27, %s26, [#allocation3], 64, 64, 4
    $region5: #{tpu_custom_call.1} parent=1 // pred_fallthru
      _
    // Predicated region
    $region6: #{tpu_custom_call.1} parent=1 // pred_check
      _
    $region7: #{tpu_custom_call.1} parent=1 // pred_check_branch
      %33 = sbr.rel (0) target = $region9
    $region8: #{tpu_custom_call.1} parent=1 // pred_region
      %s34 = sadd.s32 0, 0
      %p35 = scmp.lt.s32.totalorder %s34, 0
      %s36 = scalar_select %p35, %s34, 0
      %s37 = smul.u32 2, %s36
      %s38 = ssub.s32 1, %s37
      %s39 = smul.u32 64, %s38
      %s41 = ssub.s32 128, %s39
      %42 = vsyncadd [#allocation6], %s41
      %p43 = scmp.ne.s32.totalorder 0, %s39
      %s44 = smul.addr %s37, 64
      %s45 = scalar_lea.hbm %s1, %s44
      %s46 = smul.u32 4, %s38
      %s47 = sshll.u32 [#allocation5], 4
      %s48 = int_to_ptr.vmem [resolvable:$true] %s47
      %s49 = sshll.u32 %s46, 4
      %53 = dma.hbm_to_vmem [thread:$0]  (%p43), %s45, %s49, %s48, [#allocation6], 64, 64, 4
    $region9: #{tpu_custom_call.1} parent=1 // pred_fallthru
      _
    // Predicated region
    $region10: #{tpu_custom_call.1} parent=1 // pred_check
      _
    $region11: #{tpu_custom_call.1} parent=1 // pred_check_branch
      %55 = sbr.rel (0) target = $region13
    $region12: #{tpu_custom_call.1} parent=1 // pred_region
      %56 = dma.done [#allocation3], 128
    $region13: #{tpu_custom_call.1} parent=1 // pred_fallthru
      _
    // Predicated region
    $region14: #{tpu_custom_call.1} parent=1 // pred_check
      _
    $region15: #{tpu_custom_call.1} parent=1 // pred_check_branch
      %58 = sbr.rel (0) target = $region17
    $region16: #{tpu_custom_call.1} parent=1 // pred_region
      %59 = dma.done [#allocation6], 128
    $region17: #{tpu_custom_call.1} parent=1 // pred_fallthru
      _
    %s60 = sadd.s32 0, 0
    %p61 = scmp.lt.s32.totalorder %s60, 0
    %s62 = scalar_select %p61, %s60, 0
    %s63 = smul.u32 2, %s62
    %s64 = ssub.s32 1, %s63
    %s65 = smul.u32 64, %s64
    %s66 = sadd.s32 0, 0
    %p67 = scmp.lt.s32.totalorder %s66, 0
    %s68 = scalar_select %p67, %s66, 0
    %s69 = smul.u32 2, %s68
    %s70 = ssub.s32 1, %s69
    %s71 = smul.u32 64, %s70
    %s72 = sadd.s32 0, 0
    %p73 = scmp.eq.s32.totalorder 0, 0
    // Predicated region
    $region18: #{tpu_custom_call.1} parent=1 // pred_check
      %p74 = pneg %p73
    $region19: #{tpu_custom_call.1} parent=1 // pred_check_branch
      %76 = sbr.rel (%p74) target = $region21
    $region20: #{tpu_custom_call.1} parent=1 // pred_region
      %77 = vst [vmem:[#allocation7] sm:$0xff] 0.0
      %78 = vst [vmem:[#allocation7 + $0x8] sm:$0xff] 0.0
      %79 = vst [vmem:[#allocation7 + $0x10] sm:$0xff] 0.0
      %80 = vst [vmem:[#allocation7 + $0x18] sm:$0xff] 0.0
    $region21: #{tpu_custom_call.1} parent=1 // pred_fallthru
      _
    %v81 = vld [vmem:[#allocation2] sm:$0xff]
    %v82 = vld [vmem:[#allocation5] sm:$0xff]
    %v83 = vand.u32 2147483647, %v81
    %v84 = vsub.f32 0.0, %v83
    %v85 = vmul.f32 %v84, 1.442695
    %v86 = vpow.pop %v85
    %v87 = vadd.f32 %v86, 1.0
    %v88 = vlog2.pop %v87
    %v89 = vmul.f32 %v88, 0.6931472
    %v90 = vmul.f32 -0.5, %v86
    %v91 = vadd.f32 %v90, 1.0
    %v92 = vmul.f32 %v91, %v86
    %v93 = vand.u32 2147483647, %v86
    %vm94 = vcmp.lt.f32.partialorder %v93, 0.0004427343
    %v95 = vsel %vm94, %v92, %v89
    %v96 = vmax.f32 %v81, 0.0
    %v97 = vmul.f32 %v81, %v82
    %v98 = vsub.f32 %v96, %v97
    %v99 = vadd.f32 %v98, %v95
    %v100 = vadd.f32 %v86, 1.0
    %v101 = vrcp.pop %v100
    %vm102 = vcmp.ge.f32.partialorder %v81, 0.0
    %v103 = vmul.f32 %v86, %v101
    %v104 = vsel %vm102, %v101, %v103
    %v105 = vmul.f32 %v104, %v82
    %p106 = scmp.lt.s32.totalorder %s72, 0
    // Predicated region
    $region22: #{tpu_custom_call.1} parent=1 // pred_check
      %p107 = pneg %p106
    $region23: #{tpu_custom_call.1} parent=1 // pred_check_branch
      %109 = sbr.rel (%p107) target = $region25
    $region24: #{tpu_custom_call.1} parent=1 // pred_region
      %v110 = vadd.f32 %v99, 0.0
      %v111 = vadd.f32 %v105, 0.0
      %v112 = vadd.f32 %v104, 0.0
      %v113 = vadd.f32 %v82, 0.0
      %v114 = vld [vmem:[#allocation7] sm:$0xff]
      %v115 = vld [vmem:[#allocation7 + $0x8] sm:$0xff]
      %v116 = vld [vmem:[#allocation7 + $0x10] sm:$0xff]
      %v117 = vld [vmem:[#allocation7 + $0x18] sm:$0xff]
      %v118 = vadd.f32 %v114, %v110
      %v119 = vadd.f32 %v115, %v111
      %v120 = vadd.f32 %v116, %v112
      %v121 = vadd.f32 %v117, %v113
      %122 = vst [vmem:[#allocation7] sm:$0xff] %v118
      %123 = vst [vmem:[#allocation7 + $0x8] sm:$0xff] %v119
      %124 = vst [vmem:[#allocation7 + $0x10] sm:$0xff] %v120
      %125 = vst [vmem:[#allocation7 + $0x18] sm:$0xff] %v121
    $region25: #{tpu_custom_call.1} parent=1 // pred_fallthru
      _
    %p126 = scmp.ge.s32.totalorder %s72, 0
    // Predicated region
    $region26: #{tpu_custom_call.1} parent=1 // pred_check
      %p127 = pneg %p126
    $region27: #{tpu_custom_call.1} parent=1 // pred_check_branch
      %129 = sbr.rel (%p127) target = $region29
    $region28: #{tpu_custom_call.1} parent=1 // pred_region
      %v130 = vlaneseq
      %v131 = vshrl.u32 %v130, 7
      %v132 = vlaneseq
      %v133 = vand.u32 %v132, 127
      %s134 = smul.u32 %s72, 1024
      %v135 = vmul.u32 %v131, 128
      %v136 = vstv %s134
      %v137 = vadd.s32 %v136, %v135
      %v138 = vadd.s32 %v137, %v133
      %vm139 = vcmp.lt.s32.totalorder %v138, 512
      %v140 = vsel %vm139, %v99, 0.0
      %v141 = vsel %vm139, %v105, 0.0
      %v142 = vsel %vm139, %v104, 0.0
      %v143 = vsel %vm139, %v82, 0.0
      %v144 = vadd.f32 %v140, 0.0
      %v145 = vadd.f32 %v141, 0.0
      %v146 = vadd.f32 %v142, 0.0
      %v147 = vadd.f32 %v143, 0.0
      %v148 = vld [vmem:[#allocation7] sm:$0xff]
      %v149 = vld [vmem:[#allocation7 + $0x8] sm:$0xff]
      %v150 = vld [vmem:[#allocation7 + $0x10] sm:$0xff]
      %v151 = vld [vmem:[#allocation7 + $0x18] sm:$0xff]
      %v152 = vadd.f32 %v148, %v144
      %v153 = vadd.f32 %v149, %v145
      %v154 = vadd.f32 %v150, %v146
      %v155 = vadd.f32 %v151, %v147
      %156 = vst [vmem:[#allocation7] sm:$0xff] %v152
      %157 = vst [vmem:[#allocation7 + $0x8] sm:$0xff] %v153
      %158 = vst [vmem:[#allocation7 + $0x10] sm:$0xff] %v154
      %159 = vst [vmem:[#allocation7 + $0x18] sm:$0xff] %v155
    $region29: #{tpu_custom_call.1} parent=1 // pred_fallthru
      _
    // Predicated region
    $region30: #{tpu_custom_call.1} parent=1 // pred_check
      _
    $region31: #{tpu_custom_call.1} parent=1 // pred_check_branch
      %161 = sbr.rel (0) target = $region33
    $region32: #{tpu_custom_call.1} parent=1 // pred_region
      %s163 = ssub.s32 512, 512
      %164 = vsyncadd [#allocation4], %s163
      %s165 = sshll.u32 [#allocation7], 4
      %s166 = int_to_ptr.vmem [resolvable:$true] %s165
      %171 = dma.vmem_to_hbm [thread:$0]  %s166, 512, %s2, [#allocation4], 128, 128, 8
    $region33: #{tpu_custom_call.1} parent=1 // pred_fallthru
      _
    // Predicated region
    $region34: #{tpu_custom_call.1} parent=1 // pred_check
      _
    $region35: #{tpu_custom_call.1} parent=1 // pred_check_branch
      %173 = sbr.rel (0) target = $region37
    $region36: #{tpu_custom_call.1} parent=1 // pred_region
      %174 = dma.done [#allocation4], 512
    $region37: #{tpu_custom_call.1} parent=1 // pred_fallthru
      _
    %175 = vsyncpa [#allocation3], 1
    %176 = vsyncpa [#allocation6], 1
    %177 = vsyncpa [#allocation4], 1

</llo_original>
